<compile_context>
chip_gen: v6e
topology: v6e:2x2x1
jax: 0.10.0
libtpu: 0.0.40
codegen_flags: <defaults>
</compile_context>

<pallas_src>
import functools

import jax
import jax.numpy as jnp
from jax.experimental import pallas as pl
from jax.experimental.pallas import tpu as pltpu

_LANE = 128
_SUBLANE = 8


def _round_up(n, m):
    return ((n + m - 1) // m) * m


def _round_down_clamped(n, m):
    return max(m, (n // m) * m)


def _supports_pipeline_mode():
    try:
        pl.BlockSpec((_SUBLANE, _LANE), lambda i: (0, 0),
                     pipeline_mode=pl.Buffered(1))
        return True
    except Exception:
        return False


_HAS_PIPELINE_MODE = _supports_pipeline_mode()


def _vmem_capacity_bytes():
    try:
        return int(pltpu.get_tpu_info().vmem_capacity_bytes)
    except Exception:
        return 128 * 1024 * 1024   # v5e/v6e default; conservative estimate path


def _adapter_kernel(x_ref, w1_ref, b1_ref, w2_ref, b2_ref, o_ref, *, add_residual):
    x = x_ref[...]                                               # (tm, H), storage dtype
    # fc1 + ReLU: native-dtype MXU operands, f32 accumulation.
    h = jnp.dot(x, w1_ref[...], preferred_element_type=jnp.float32)
    h = jnp.maximum(h + b1_ref[...].astype(jnp.float32), 0.0)    # f32 (tm, A)
    # fc2 + ReLU: feed the MXU in the weight storage dtype again.
    h = jnp.dot(h.astype(w2_ref.dtype), w2_ref[...],
                preferred_element_type=jnp.float32)
    h = jnp.maximum(h + b2_ref[...].astype(jnp.float32), 0.0)    # f32 (tm, H)
    if add_residual:
        if o_ref.dtype == jnp.bfloat16 and x.dtype == jnp.bfloat16:
            # bf16 epilogue: skip the f32 upcast of the residual (v6e/v7x VPU
            # is bf16-native; output is bf16 anyway).
            o_ref[...] = h.astype(jnp.bfloat16) + x
        else:
            o_ref[...] = (h + x.astype(jnp.float32)).astype(o_ref.dtype)
    else:
        o_ref[...] = h.astype(o_ref.dtype)


def _resident_spec(shape, buffered):
    ndim = len(shape)
    index_map = lambda i, _nd=ndim: (0,) * _nd
    if buffered and _HAS_PIPELINE_MODE:
        # Constant index_map -> never re-fetched; one buffer is enough.
        return pl.BlockSpec(shape, index_map, pipeline_mode=pl.Buffered(1))
    return pl.BlockSpec(shape, index_map)


def _build_call(N, H, A, tm, out_dtype, add_residual, vmem_limit, buffered):
    kernel = functools.partial(_adapter_kernel, add_residual=add_residual)
    return pl.pallas_call(
        kernel,
        out_shape=jax.ShapeDtypeStruct((N, H), out_dtype),
        grid_spec=pltpu.PrefetchScalarGridSpec(
            num_scalar_prefetch=0,
            grid=(pl.cdiv(N, tm),),
            in_specs=[
                pl.BlockSpec((tm, H), lambda i: (i, 0)),     # x row tile (streamed)
                _resident_spec((H, A), buffered),            # W1 (resident)
                _resident_spec((1, A), buffered),            # b1 (resident)
                _resident_spec((A, H), buffered),            # W2 (resident)
                _resident_spec((1, H), buffered),            # b2 (resident)
            ],
            out_specs=pl.BlockSpec((tm, H), lambda i: (i, 0)),
        ),
        compiler_params=pltpu.CompilerParams(
            dimension_semantics=("parallel",),   # shards row grid across TCs on v7x
            vmem_limit_bytes=vmem_limit,
        ),
    )


def adapter_forward(x, w1, b1, w2, b2, *, add_residual=True, tm=512,
                    vmem_budget_bytes=None):
    """Adapter forward pass.

    x:  [..., H]   activations (any leading batch dims)
    w1: [H, A]     fc1 weight, stored pre-transposed as [in, out]
    b1: [A]
    w2: [A, H]     fc2 weight, stored pre-transposed as [in, out]
    b2: [H]
    """
    orig_shape = x.shape
    H = orig_shape[-1]
    A = w1.shape[1]
    assert w1.shape == (H, A) and w2.shape == (A, H)
    assert b1.shape == (A,) and b2.shape == (H,)

    x2d = x.reshape(-1, H)
    N = x2d.shape[0]

    xbytes = jnp.dtype(x.dtype).itemsize
    wbytes = jnp.dtype(w1.dtype).itemsize

    # Lane-padded widths (VMEM accounting only; no host-side padding is done).
    Hp = _round_up(H, _LANE)
    Ap = _round_up(A, _LANE)

    cap = _vmem_capacity_bytes()
    budget = vmem_budget_bytes if vmem_budget_bytes is not None else (cap * 3) // 4

    weight_bufs = 1 if _HAS_PIPELINE_MODE else 2
    resident = weight_bufs * ((Hp * Ap + Ap * Hp) * wbytes
                              + _SUBLANE * (Ap + Hp) * wbytes)

    def per_tile(rows):
        stream = 4 * rows * Hp * xbytes          # x + out tiles, double-buffered
        interm = rows * (Ap + 2 * Hp) * 4        # f32 fc1 out, fc2 acc, residual upcast
        return stream + interm

    # Minimum legal/efficient row tile for the storage dtype (sublane packing):
    # f32 -> 8, bf16 -> 16, int8/fp8 -> 32.
    min_rows = _SUBLANE * max(1, 4 // xbytes)

    tm = max(min_rows, min(_round_up(tm, min_rows), _round_up(N, min_rows)))
    while tm > min_rows and resident + per_tile(tm) > budget:
        tm = _round_down_clamped(tm // 2, min_rows)
    # Give the "parallel" row axis at least 2 steps when possible so v7x's
    # second TensorCore gets work (harmless on single-TC chips).
    while tm > min_rows and pl.cdiv(N, tm) < 2:
        tm = _round_down_clamped(tm // 2, min_rows)

    est = resident + per_tile(tm)
    vmem_limit = int(max(32 * 1024 * 1024,
                         min(est + 8 * 1024 * 1024, cap - 8 * 1024 * 1024)))

    b1_2d = b1.reshape(1, A)
    b2_2d = b2.reshape(1, H)
    args = (x2d, w1, b1_2d, w2, b2_2d)

    try:
        out = _build_call(N, H, A, tm, x.dtype, add_residual, vmem_limit,
                          buffered=True)(*args)
    except Exception:
        # Fallback: default double-buffered resident operands.
        out = _build_call(N, H, A, tm, x.dtype, add_residual, vmem_limit,
                          buffered=False)(*args)

    return out.reshape(orig_shape)


def _reference(x, w1, b1, w2, b2, add_residual=True):
    xf = x.astype(jnp.float32)
    h = jnp.maximum(xf @ w1.astype(jnp.float32) + b1.astype(jnp.float32), 0.0)
    h = jnp.maximum(h @ w2.astype(jnp.float32) + b2.astype(jnp.float32), 0.0)
    return xf + h if add_residual else h


if __name__ == "__main__":
    # Small config consistent with the module: batch=2, seq=8, hidden=32, adapter=16.
    batch, seq, hidden, adapter = 2, 8, 32, 16

    key = jax.random.PRNGKey(0)
    kx, kw1, kb1, kw2, kb2 = jax.random.split(key, 5)

    x = jax.random.normal(kx, (batch, seq, hidden), dtype=jnp.float32)
    # Synthetic params with nn.Linear(hidden, adapter)/(adapter, hidden) shapes,
    # stored pre-transposed as [in, out].
    w1 = jax.random.normal(kw1, (hidden, adapter), dtype=jnp.float32) * 0.05
    b1 = jax.random.normal(kb1, (adapter,), dtype=jnp.float32) * 0.05
    w2 = jax.random.normal(kw2, (adapter, hidden), dtype=jnp.float32) * 0.05
    b2 = jax.random.normal(kb2, (hidden,), dtype=jnp.float32) * 0.05

    # f32 path, with residual (exercises unaligned H=32 / A=16 and an uneven row grid).
    out = adapter_forward(x, w1, b1, w2, b2, add_residual=True)
    jax.block_until_ready(out)
    ref = _reference(x.reshape(-1, hidden), w1, b1, w2, b2, True).reshape(x.shape)
    assert jnp.allclose(out, ref, atol=1e-5, rtol=1e-5), "f32 residual mismatch"

    # add_residual=False branch.
    out_nr = adapter_forward(x, w1, b1, w2, b2, add_residual=False)
    jax.block_until_ready(out_nr)
    ref_nr = _reference(x.reshape(-1, hidden), w1, b1, w2, b2, False).reshape(x.shape)
    assert jnp.allclose(out_nr, ref_nr, atol=1e-5, rtol=1e-5), "f32 no-residual mismatch"

    # bf16 I/O path (native bf16 MXU operands, f32 accumulation, bf16 epilogue).
    xb, w1b, b1b = x.astype(jnp.bfloat16), w1.astype(jnp.bfloat16), b1.astype(jnp.bfloat16)
    w2b, b2b = w2.astype(jnp.bfloat16), b2.astype(jnp.bfloat16)
    out_bf = adapter_forward(xb, w1b, b1b, w2b, b2b, add_residual=True)
    jax.block_until_ready(out_bf)
    ref_bf = _reference(xb.reshape(-1, hidden), w1b, b1b, w2b, b2b, True).reshape(x.shape)
    assert jnp.allclose(out_bf.astype(jnp.float32), ref_bf, atol=1e-1, rtol=1e-1), \
        "bf16 mismatch"

    print("KERNEL_OK")
</pallas_src>

<mosaic_0001>
module attributes {stable_mosaic.version = 11 : i64} {
  func.func @_adapter_kernel(%arg0: i32, %arg1: memref<8x32xf32, #tpu.memory_space<vmem>>, %arg2: memref<32x16xf32, #tpu.memory_space<vmem>>, %arg3: memref<1x16xf32, #tpu.memory_space<vmem>>, %arg4: memref<16x32xf32, #tpu.memory_space<vmem>>, %arg5: memref<1x32xf32, #tpu.memory_space<vmem>>, %arg6: memref<8x32xf32, #tpu.memory_space<vmem>>) attributes {dimension_semantics = [#tpu.dimension_semantics<parallel>], iteration_bounds = array<i64: 2>, scalar_prefetch = 0 : i64, scratch_operands = 0 : i64, tpu.core_type = #tpu.core_type<tc>, window_params = [{transform_indices = @transform_0, window_bounds = array<i64: 8, 32>}, {pipeline_mode = #tpu.pipeline_mode<synchronous>, transform_indices = @transform_1, window_bounds = array<i64: 32, 16>}, {pipeline_mode = #tpu.pipeline_mode<synchronous>, transform_indices = @transform_2, window_bounds = array<i64: 1, 16>}, {pipeline_mode = #tpu.pipeline_mode<synchronous>, transform_indices = @transform_3, window_bounds = array<i64: 16, 32>}, {pipeline_mode = #tpu.pipeline_mode<synchronous>, transform_indices = @transform_4, window_bounds = array<i64: 1, 32>}, {transform_indices = @transform_5, window_bounds = array<i64: 8, 32>}]} {
    %c0 = arith.constant 0 : index
    %c0_0 = arith.constant 0 : index
    %0 = vector.load %arg1[%c0, %c0_0] : memref<8x32xf32, #tpu.memory_space<vmem>>, vector<8x32xf32>
    %c0_1 = arith.constant 0 : index
    %c0_2 = arith.constant 0 : index
    %1 = vector.load %arg2[%c0_1, %c0_2] : memref<32x16xf32, #tpu.memory_space<vmem>>, vector<32x16xf32>
    %cst = arith.constant dense<0.000000e+00> : vector<8x16xf32>
    %2 = tpu.matmul %0, %1, %cst {dimension_numbers = #tpu.dot_dimension_numbers<[1], [0], [0], [1], [0, 0, 1, 1], [], []>} : vector<8x32xf32>, vector<32x16xf32>, vector<8x16xf32> -> vector<8x16xf32>
    %c0_3 = arith.constant 0 : index
    %c0_4 = arith.constant 0 : index
    %3 = vector.load %arg3[%c0_3, %c0_4] : memref<1x16xf32, #tpu.memory_space<vmem>>, vector<1x16xf32>
    %4 = vector.broadcast %3 : vector<1x16xf32> to vector<8x16xf32>
    %5 = arith.addf %2, %4 : vector<8x16xf32>
    %cst_5 = arith.constant 0.000000e+00 : f32
    %6 = vector.broadcast %cst_5 : f32 to vector<8x16xf32>
    %7 = arith.maximumf %5, %6 : vector<8x16xf32>
    %c0_6 = arith.constant 0 : index
    %c0_7 = arith.constant 0 : index
    %8 = vector.load %arg4[%c0_6, %c0_7] : memref<16x32xf32, #tpu.memory_space<vmem>>, vector<16x32xf32>
    %cst_8 = arith.constant dense<0.000000e+00> : vector<8x32xf32>
    %9 = tpu.matmul %7, %8, %cst_8 {dimension_numbers = #tpu.dot_dimension_numbers<[1], [0], [0], [1], [0, 0, 1, 1], [], []>} : vector<8x16xf32>, vector<16x32xf32>, vector<8x32xf32> -> vector<8x32xf32>
    %c0_9 = arith.constant 0 : index
    %c0_10 = arith.constant 0 : index
    %10 = vector.load %arg5[%c0_9, %c0_10] : memref<1x32xf32, #tpu.memory_space<vmem>>, vector<1x32xf32>
    %11 = vector.broadcast %10 : vector<1x32xf32> to vector<8x32xf32>
    %12 = arith.addf %9, %11 : vector<8x32xf32>
    %cst_11 = arith.constant 0.000000e+00 : f32
    %13 = vector.broadcast %cst_11 : f32 to vector<8x32xf32>
    %14 = arith.maximumf %12, %13 : vector<8x32xf32>
    %15 = arith.addf %14, %0 : vector<8x32xf32>
    %c0_12 = arith.constant 0 : index
    %c0_13 = arith.constant 0 : index
    %16 = vector.load %arg6[%c0_12, %c0_13] : memref<8x32xf32, #tpu.memory_space<vmem>>, vector<8x32xf32>
    tpu.vector_store %arg6[%c0_12, %c0_13], %15 {strides = array<i32>} : memref<8x32xf32, #tpu.memory_space<vmem>>, vector<8x32xf32>,
    return
  }
  func.func @transform_0(%arg0: i32) -> (i32, i32) {
    %c0_i32 = arith.constant 0 : i32
    %c0_i32_0 = arith.constant 0 : i32
    return %arg0, %c0_i32 : i32, i32
  }
  func.func @transform_1(%arg0: i32) -> (i32, i32) {
    %c0_i32 = arith.constant 0 : i32
    %c0_i32_0 = arith.constant 0 : i32
    %c0_i32_1 = arith.constant 0 : i32
    return %c0_i32, %c0_i32_0 : i32, i32
  }
  func.func @transform_2(%arg0: i32) -> (i32, i32) {
    %c0_i32 = arith.constant 0 : i32
    %c0_i32_0 = arith.constant 0 : i32
    %c0_i32_1 = arith.constant 0 : i32
    return %c0_i32, %c0_i32_0 : i32, i32
  }
  func.func @transform_3(%arg0: i32) -> (i32, i32) {
    %c0_i32 = arith.constant 0 : i32
    %c0_i32_0 = arith.constant 0 : i32
    %c0_i32_1 = arith.constant 0 : i32
    return %c0_i32, %c0_i32_0 : i32, i32
  }
  func.func @transform_4(%arg0: i32) -> (i32, i32) {
    %c0_i32 = arith.constant 0 : i32
    %c0_i32_0 = arith.constant 0 : i32
    %c0_i32_1 = arith.constant 0 : i32
    return %c0_i32, %c0_i32_0 : i32, i32
  }
  func.func @transform_5(%arg0: i32) -> (i32, i32) {
    %c0_i32 = arith.constant 0 : i32
    %c0_i32_0 = arith.constant 0 : i32
    return %arg0, %c0_i32 : i32, i32
  }
}

module attributes {stable_mosaic.version = 11 : i64} {
  func.func @_adapter_kernel(%arg0: i32, %arg1: memref<8x32xf32, #tpu.memory_space<vmem>>, %arg2: memref<32x16xf32, #tpu.memory_space<vmem>>, %arg3: memref<1x16xf32, #tpu.memory_space<vmem>>, %arg4: memref<16x32xf32, #tpu.memory_space<vmem>>, %arg5: memref<1x32xf32, #tpu.memory_space<vmem>>, %arg6: memref<8x32xf32, #tpu.memory_space<vmem>>) attributes {dimension_semantics = [#tpu.dimension_semantics<parallel>], iteration_bounds = array<i64: 2>, scalar_prefetch = 0 : i64, scratch_operands = 0 : i64, tpu.core_type = #tpu.core_type<tc>, window_params = [{transform_indices = @transform_0, window_bounds = array<i64: 8, 32>}, {pipeline_mode = #tpu.pipeline_mode<synchronous>, transform_indices = @transform_1, window_bounds = array<i64: 32, 16>}, {pipeline_mode = #tpu.pipeline_mode<synchronous>, transform_indices = @transform_2, window_bounds = array<i64: 1, 16>}, {pipeline_mode = #tpu.pipeline_mode<synchronous>, transform_indices = @transform_3, window_bounds = array<i64: 16, 32>}, {pipeline_mode = #tpu.pipeline_mode<synchronous>, transform_indices = @transform_4, window_bounds = array<i64: 1, 32>}, {transform_indices = @transform_5, window_bounds = array<i64: 8, 32>}]} {
    %c0 = arith.constant 0 : index
    %c0_0 = arith.constant 0 : index
    %0 = vector.load %arg1[%c0, %c0_0] : memref<8x32xf32, #tpu.memory_space<vmem>>, vector<8x32xf32>
    %c0_1 = arith.constant 0 : index
    %c0_2 = arith.constant 0 : index
    %1 = vector.load %arg2[%c0_1, %c0_2] : memref<32x16xf32, #tpu.memory_space<vmem>>, vector<32x16xf32>
    %cst = arith.constant dense<0.000000e+00> : vector<8x16xf32>
    %2 = tpu.matmul %0, %1, %cst {dimension_numbers = #tpu.dot_dimension_numbers<[1], [0], [0], [1], [0, 0, 1, 1], [], []>} : vector<8x32xf32>, vector<32x16xf32>, vector<8x16xf32> -> vector<8x16xf32>
    %c0_3 = arith.constant 0 : index
    %c0_4 = arith.constant 0 : index
    %3 = vector.load %arg3[%c0_3, %c0_4] : memref<1x16xf32, #tpu.memory_space<vmem>>, vector<1x16xf32>
    %4 = vector.broadcast %3 : vector<1x16xf32> to vector<8x16xf32>
    %5 = arith.addf %2, %4 : vector<8x16xf32>
    %cst_5 = arith.constant 0.000000e+00 : f32
    %6 = vector.broadcast %cst_5 : f32 to vector<8x16xf32>
    %7 = arith.maximumf %5, %6 : vector<8x16xf32>
    %c0_6 = arith.constant 0 : index
    %c0_7 = arith.constant 0 : index
    %8 = vector.load %arg4[%c0_6, %c0_7] : memref<16x32xf32, #tpu.memory_space<vmem>>, vector<16x32xf32>
    %cst_8 = arith.constant dense<0.000000e+00> : vector<8x32xf32>
    %9 = tpu.matmul %7, %8, %cst_8 {dimension_numbers = #tpu.dot_dimension_numbers<[1], [0], [0], [1], [0, 0, 1, 1], [], []>} : vector<8x16xf32>, vector<16x32xf32>, vector<8x32xf32> -> vector<8x32xf32>
    %c0_9 = arith.constant 0 : index
    %c0_10 = arith.constant 0 : index
    %10 = vector.load %arg5[%c0_9, %c0_10] : memref<1x32xf32, #tpu.memory_space<vmem>>, vector<1x32xf32>
    %11 = vector.broadcast %10 : vector<1x32xf32> to vector<8x32xf32>
    %12 = arith.addf %9, %11 : vector<8x32xf32>
    %cst_11 = arith.constant 0.000000e+00 : f32
    %13 = vector.broadcast %cst_11 : f32 to vector<8x32xf32>
    %14 = arith.maximumf %12, %13 : vector<8x32xf32>
    %15 = arith.addf %14, %0 : vector<8x32xf32>
    %c0_12 = arith.constant 0 : index
    %c0_13 = arith.constant 0 : index
    %16 = vector.load %arg6[%c0_12, %c0_13] : memref<8x32xf32, #tpu.memory_space<vmem>>, vector<8x32xf32>
    tpu.vector_store %arg6[%c0_12, %c0_13], %15 {strides = array<i32>} : memref<8x32xf32, #tpu.memory_space<vmem>>, vector<8x32xf32>,
    return
  }
  func.func @transform_0(%arg0: i32) -> (i32, i32) {
    %c0_i32 = arith.constant 0 : i32
    %c0_i32_0 = arith.constant 0 : i32
    return %arg0, %c0_i32 : i32, i32
  }
  func.func @transform_1(%arg0: i32) -> (i32, i32) {
    %c0_i32 = arith.constant 0 : i32
    %c0_i32_0 = arith.constant 0 : i32
    %c0_i32_1 = arith.constant 0 : i32
    return %c0_i32, %c0_i32_0 : i32, i32
  }
  func.func @transform_2(%arg0: i32) -> (i32, i32) {
    %c0_i32 = arith.constant 0 : i32
    %c0_i32_0 = arith.constant 0 : i32
    %c0_i32_1 = arith.constant 0 : i32
    return %c0_i32, %c0_i32_0 : i32, i32
  }
  func.func @transform_3(%arg0: i32) -> (i32, i32) {
    %c0_i32 = arith.constant 0 : i32
    %c0_i32_0 = arith.constant 0 : i32
    %c0_i32_1 = arith.constant 0 : i32
    return %c0_i32, %c0_i32_0 : i32, i32
  }
  func.func @transform_4(%arg0: i32) -> (i32, i32) {
    %c0_i32 = arith.constant 0 : i32
    %c0_i32_0 = arith.constant 0 : i32
    %c0_i32_1 = arith.constant 0 : i32
    return %c0_i32, %c0_i32_0 : i32, i32
  }
  func.func @transform_5(%arg0: i32) -> (i32, i32) {
    %c0_i32 = arith.constant 0 : i32
    %c0_i32_0 = arith.constant 0 : i32
    return %arg0, %c0_i32 : i32, i32
  }
}

</mosaic_0001>

<llo_original>
// kernel: tpu_custom_call.1
$region0: #{tpu_custom_call.1}
  #allocation0 [shape = 'u32[]', space=smem, size = 0x4, offset = 0x4, fixed_abs, tag = 'smem constant byte address 0x4 - core index']
  #allocation1 [shape = 'u32[144,128]{1,0:T(1,128)}', space=vmem, size = 0x12000, scoped, tag = 'internal scratch']
  %s0 = inlined_call_operand.vmem [shape: f32[16,32], index: 0, kind: input, shape index: {}]
  %s1 = inlined_call_operand.vmem [shape: f32[32,16], index: 1, kind: input, shape index: {}]
  %s2 = inlined_call_operand.vmem [shape: f32[1,16], index: 2, kind: input, shape index: {}]
  %s3 = inlined_call_operand.vmem [shape: f32[16,32], index: 3, kind: input, shape index: {}]
  %s4 = inlined_call_operand.vmem [shape: f32[1,32], index: 4, kind: input, shape index: {}]
  %s5 = inlined_call_operand.hbm [shape: f32[16,32], index: 5, kind: output, shape index: {}]
  %s6 = sld [smem:[#allocation0]]
  $region53: #{tpu_custom_call.1} parent=0
    _
  %s8 = ssub.s32 1, %s6
  %s9 = scalar_select 0, %s8, %s6
  $region1: #{tpu_custom_call.1} parent=0
    #allocation2 [shape = 'u8[8192]{0}', space=vmem, size = 0x2000, scoped, tag = 'output window, operand 0']
    #allocation3 [shape = 's32[2]{0}', space=sflag, size = 0x8, scoped, tag = 'scoped memory for tpu_custom_call.1']
    %10 = vsyncpa [#allocation3], 0
    %s11 = scalar_lea.sflag [#allocation3], 1
    %12 = vsyncpa %s11, 0
    loop: start=0, step=1, limit=4
    $region2: #{tpu_custom_call.1} parent=1 // loop_pre_header
      _
    $region3: #{tpu_custom_call.1} parent=1 // loop_header
      %s14 = sphi 0, %s18
      %p15 = scmp.ge.s32.totalorder %s14, 4
      %s24 = sphi 0, %s26
      %s27 = sphi 0, %s24
      %s28 = sphi 0, %s27
      %s44 = sphi 0, %s28
      %s48 = sphi 0, %s48
      %s50 = sphi 0, %s48
      %s51 = sphi 0, %s50
      %s65 = sphi 0, %s51
      %s69 = sphi 0, %s69
      %s71 = sphi 0, %s69
      %s72 = sphi 0, %s71
      %s86 = sphi 0, %s72
      %s90 = sphi 0, %s90
      %s92 = sphi 0, %s90
      %s93 = sphi 0, %s92
      %s107 = sphi 0, %s93
      %s111 = sphi 0, %s111
      %s113 = sphi 0, %s111
      %s114 = sphi 0, %s113
      %s128 = sphi 0, %s114
      %s134 = sphi 0, %s136
      %s137 = sphi 0, %s134
      %s138 = sphi 0, %s137
      %s154 = sphi 0, %s138
    $region4: #{tpu_custom_call.1} parent=1 // loop_header_branch
      %17 = sbr.rel (%p15) target = $region8
    $region5: #{tpu_custom_call.1} parent=1 // loop_body
      %s19 = ssub.s32 %s14, 1
      %s20 = ssub.s32 %s14, 2
      %s21 = sadd.s32 %s14, 1
      %s22 = ssub.s32 %s14, %s21
      %p23 = scmp.eq.s32.totalorder %s22, 0
      %s25 = sadd.s32 %s24, 1
      %s26 = scalar_select %p23, %s24, %s25
      %p29 = pneg %p23
      %p30 = scmp.eq.s32.totalorder %s14, 1
      %p31 = por %p29, %p30
      %p32 = scmp.ne.s32.totalorder %s24, %s27
      %p33 = scmp.eq.s32.totalorder %s14, 0
      %p34 = por %p32, %p33
      %p35 = scmp.ne.s32.totalorder %s24, %s27
      %p36 = scmp.eq.s32.totalorder %s19, 1
      %p37 = por %p35, %p36
      %p38 = scmp.ne.s32.totalorder %s27, %s28
      %p39 = scmp.eq.s32.totalorder %s19, 0
      %p40 = por %p38, %p39
      %p41 = scmp.ne.s32.totalorder %s27, %s28
      %p42 = scmp.eq.s32.totalorder %s20, 1
      %p43 = por %p41, %p42
      %p45 = scmp.ne.s32.totalorder %s28, %s44
      %p46 = scmp.eq.s32.totalorder %s20, 0
      %p47 = por %p45, %p46
      %s49 = sadd.s32 %s48, 1
      %p52 = scmp.eq.s32.totalorder %s14, 1
      %p53 = scmp.ne.s32.totalorder %s48, %s50
      %p54 = scmp.eq.s32.totalorder %s14, 0
      %p55 = por %p53, %p54
      %p56 = scmp.ne.s32.totalorder %s48, %s50
      %p57 = scmp.eq.s32.totalorder %s19, 1
      %p58 = por %p56, %p57
      %p59 = scmp.ne.s32.totalorder %s50, %s51
      %p60 = scmp.eq.s32.totalorder %s19, 0
      %p61 = por %p59, %p60
      %p62 = scmp.ne.s32.totalorder %s50, %s51
      %p63 = scmp.eq.s32.totalorder %s20, 1
      %p64 = por %p62, %p63
      %p66 = scmp.ne.s32.totalorder %s51, %s65
      %p67 = scmp.eq.s32.totalorder %s20, 0
      %p68 = por %p66, %p67
      %s70 = sadd.s32 %s69, 1
      %p73 = scmp.eq.s32.totalorder %s14, 1
      %p74 = scmp.ne.s32.totalorder %s69, %s71
      %p75 = scmp.eq.s32.totalorder %s14, 0
      %p76 = por %p74, %p75
      %p77 = scmp.ne.s32.totalorder %s69, %s71
      %p78 = scmp.eq.s32.totalorder %s19, 1
      %p79 = por %p77, %p78
      %p80 = scmp.ne.s32.totalorder %s71, %s72
      %p81 = scmp.eq.s32.totalorder %s19, 0
      %p82 = por %p80, %p81
      %p83 = scmp.ne.s32.totalorder %s71, %s72
      %p84 = scmp.eq.s32.totalorder %s20, 1
      %p85 = por %p83, %p84
      %p87 = scmp.ne.s32.totalorder %s72, %s86
      %p88 = scmp.eq.s32.totalorder %s20, 0
      %p89 = por %p87, %p88
      %s91 = sadd.s32 %s90, 1
      %p94 = scmp.eq.s32.totalorder %s14, 1
      %p95 = scmp.ne.s32.totalorder %s90, %s92
      %p96 = scmp.eq.s32.totalorder %s14, 0
      %p97 = por %p95, %p96
      %p98 = scmp.ne.s32.totalorder %s90, %s92
      %p99 = scmp.eq.s32.totalorder %s19, 1
      %p100 = por %p98, %p99
      %p101 = scmp.ne.s32.totalorder %s92, %s93
      %p102 = scmp.eq.s32.totalorder %s19, 0
      %p103 = por %p101, %p102
      %p104 = scmp.ne.s32.totalorder %s92, %s93
      %p105 = scmp.eq.s32.totalorder %s20, 1
      %p106 = por %p104, %p105
      %p108 = scmp.ne.s32.totalorder %s93, %s107
      %p109 = scmp.eq.s32.totalorder %s20, 0
      %p110 = por %p108, %p109
      %s112 = sadd.s32 %s111, 1
      %p115 = scmp.eq.s32.totalorder %s14, 1
      %p116 = scmp.ne.s32.totalorder %s111, %s113
      %p117 = scmp.eq.s32.totalorder %s14, 0
      %p118 = por %p116, %p117
      %p119 = scmp.ne.s32.totalorder %s111, %s113
      %p120 = scmp.eq.s32.totalorder %s19, 1
      %p121 = por %p119, %p120
      %p122 = scmp.ne.s32.totalorder %s113, %s114
      %p123 = scmp.eq.s32.totalorder %s19, 0
      %p124 = por %p122, %p123
      %p125 = scmp.ne.s32.totalorder %s113, %s114
      %p126 = scmp.eq.s32.totalorder %s20, 1
      %p127 = por %p125, %p126
      %p129 = scmp.ne.s32.totalorder %s114, %s128
      %p130 = scmp.eq.s32.totalorder %s20, 0
      %p131 = por %p129, %p130
      %s132 = ssub.s32 %s14, %s21
      %p133 = scmp.eq.s32.totalorder %s132, 0
      %s135 = sadd.s32 %s134, 1
      %s136 = scalar_select %p133, %s134, %s135
      %p139 = pneg %p133
      %p140 = scmp.eq.s32.totalorder %s14, 1
      %p141 = por %p139, %p140
      %p142 = scmp.ne.s32.totalorder %s134, %s137
      %p143 = scmp.eq.s32.totalorder %s14, 0
      %p144 = por %p142, %p143
      %p145 = scmp.ne.s32.totalorder %s134, %s137
      %p146 = scmp.eq.s32.totalorder %s19, 1
      %p147 = por %p145, %p146
      %p148 = scmp.ne.s32.totalorder %s137, %s138
      %p149 = scmp.eq.s32.totalorder %s19, 0
      %p150 = por %p148, %p149
      %p151 = scmp.ne.s32.totalorder %s137, %s138
      %p152 = scmp.eq.s32.totalorder %s20, 1
      %p153 = por %p151, %p152
      %p155 = scmp.ne.s32.totalorder %s138, %s154
      %p156 = scmp.eq.s32.totalorder %s20, 0
      %p157 = por %p155, %p156
      %p158 = scmp.le.s32.totalorder 1, %s14
      %p159 = scmp.lt.s32.totalorder %s14, 3
      %p160 = pnand %p158, %p159
      %p161 = pneg %p160
      // Predicated region
      $region9: #{tpu_custom_call.1} parent=5 // pred_check
        _
      $region10: #{tpu_custom_call.1} parent=5 // pred_check_branch
        %163 = sbr.rel (%p160) target = $region12
      $region11: #{tpu_custom_call.1} parent=5 // pred_region
        %s164 = ssub.s32 %s14, 1
        // Predicated region
        $region13: #{tpu_custom_call.1} parent=11 // pred_check
          %p165 = pneg %p61
        $region14: #{tpu_custom_call.1} parent=11 // pred_check_branch
          %167 = sbr.rel (%p165) target = $region16
        $region15: #{tpu_custom_call.1} parent=11 // pred_region
          _
        $region16: #{tpu_custom_call.1} parent=11 // pred_fallthru
          _
        // Predicated region
        $region17: #{tpu_custom_call.1} parent=11 // pred_check
          %p168 = pneg %p82
        $region18: #{tpu_custom_call.1} parent=11 // pred_check_branch
          %170 = sbr.rel (%p168) target = $region20
        $region19: #{tpu_custom_call.1} parent=11 // pred_region
          _
        $region20: #{tpu_custom_call.1} parent=11 // pred_fallthru
          _
        // Predicated region
        $region21: #{tpu_custom_call.1} parent=11 // pred_check
          %p171 = pneg %p103
        $region22: #{tpu_custom_call.1} parent=11 // pred_check_branch
          %173 = sbr.rel (%p171) target = $region24
        $region23: #{tpu_custom_call.1} parent=11 // pred_region
          _
        $region24: #{tpu_custom_call.1} parent=11 // pred_fallthru
          _
        // Predicated region
        $region25: #{tpu_custom_call.1} parent=11 // pred_check
          %p174 = pneg %p124
        $region26: #{tpu_custom_call.1} parent=11 // pred_check_branch
          %176 = sbr.rel (%p174) target = $region28
        $region27: #{tpu_custom_call.1} parent=11 // pred_region
          _
        $region28: #{tpu_custom_call.1} parent=11 // pred_fallthru
          _
      $region12: #{tpu_custom_call.1} parent=5 // pred_fallthru
        _
      %p177 = scmp.lt.s32.totalorder %s14, 2
      // Predicated region
      $region29: #{tpu_custom_call.1} parent=5 // pred_check
        %p178 = pneg %p177
      $region30: #{tpu_custom_call.1} parent=5 // pred_check_branch
        %180 = sbr.rel (%p178) target = $region32
      $region31: #{tpu_custom_call.1} parent=5 // pred_region
        // Predicated region
        $region33: #{tpu_custom_call.1} parent=31 // pred_check
          %p181 = pneg %p34
        $region34: #{tpu_custom_call.1} parent=31 // pred_check_branch
          %183 = sbr.rel (%p181) target = $region36
        $region35: #{tpu_custom_call.1} parent=31 // pred_region
          %p184 = scmp.lt.s32.totalorder %s14, 1
          %s185 = scalar_select %p184, %s14, 1
          %s186 = smul.addr %s185, 8
          %s187 = scalar_lea.vmem %s0, %s186
        $region36: #{tpu_custom_call.1} parent=31 // pred_fallthru
          _
      $region32: #{tpu_custom_call.1} parent=5 // pred_fallthru
        _
      %p188 = scmp.le.s32.totalorder 1, %s14
      %p189 = scmp.lt.s32.totalorder %s14, 3
      %p190 = pnand %p188, %p189
      %p191 = pneg %p190
      // Predicated region
      $region37: #{tpu_custom_call.1} parent=5 // pred_check
        _
      $region38: #{tpu_custom_call.1} parent=5 // pred_check_branch
        %193 = sbr.rel (%p190) target = $region40
      $region39: #{tpu_custom_call.1} parent=5 // pred_region
        %s194 = ssub.s32 %s14, 1
        %p195 = scmp.lt.s32.totalorder %s19, 1
        %s196 = scalar_select %p195, %s19, 1
        %s197 = smul.addr %s196, 8
        %s198 = scalar_lea.vmem %s0, %s197
        %p199 = pneg %p40
        %p200 = pneg %p37
        %p201 = pneg %p61
        %p202 = pneg %p58
        %p203 = pneg %p82
        %p204 = pneg %p79
        %p205 = pneg %p103
        %p206 = pneg %p100
        %p207 = pneg %p124
        %p208 = pneg %p121
        %p209 = pneg %p150
        %p210 = pneg %p147
        %s211 = sand.u32 %s137, 1
        %s212 = scalar_lea.sflag [#allocation3], %s211
        %s213 = sand.u32 %s137, 1
        %s214 = smul.addr %s213, 8
        %s215 = scalar_lea.vmem [#allocation2], %s214
        %p216 = scmp.lt.s32.totalorder %s19, 1
        %s217 = scalar_select %p216, %s19, 1
        %s218 = smul.addr %s217, 8
        %s219 = scalar_lea.vmem %s0, %s218
        %v220 = vld [vmem:[%s219] sm:$0xff]
        %v221 = vld [vmem:[%s1] sm:$0xff]
        %v222 = vld [vmem:[%s1 + $0x8] sm:$0xff]
        %v223 = vld [vmem:[%s1 + $0x10] sm:$0xff]
        %v224 = vld [vmem:[%s1 + $0x18] sm:$0xff]
        %v225 = vld [vmem:[%s2] sm:$0x1]
        %v227 = vlaneseq
        %v228 = vshrl.u32 %v227, 7
        %v229 = vsub.s32 0, %v228
        %v230 = vrot.slane %v225, %v229
        %vm232 = vcmask 261120
        %v234 = vsel %vm232, %v220, 0
        %236 = vmatprep.subr.mxu0 0.0
        %237 = vmatpush1.msra.mxu0 0.0
        %238 = vmatprep.subr.mxu0 0.0
        %239 = vmatpush1.msra.mxu0 0.0
        %240 = vmatprep.subr.mxu0 0.0
        %241 = vmatpush1.msra.mxu0 0.0
        %242 = vmatprep.subr.mxu0 0.0
        %243 = vmatpush1.msra.mxu0 0.0
        %244 = vmatprep.subr.mxu0 0.0
        %245 = vmatpush1.msra.mxu0 0.0
        %246 = vmatprep.subr.mxu0 0.0
        %247 = vmatpush1.msra.mxu0 0.0
        %248 = vmatprep.subr.mxu0 0.0
        %249 = vmatpush1.msra.mxu0 0.0
        %250 = vmatprep.subr.mxu0 0.0
        %251 = vmatpush1.msra.mxu0 0.0
        %252 = vmatprep.subr.mxu0 0.0
        %253 = vmatpush1.msra.mxu0 0.0
        %254 = vmatprep.subr.mxu0 0.0
        %255 = vmatpush1.msra.mxu0 0.0
        %256 = vmatprep.subr.mxu0 0.0
        %257 = vmatpush1.msra.mxu0 0.0
        %258 = vmatprep.subr.mxu0 0.0
        %259 = vmatpush1.msra.mxu0 0.0
        %260 = vmatprep.subr.mxu0 0.0
        %261 = vmatpush1.msra.mxu0 %v224
        %262 = vmatprep.subr.mxu0 0.0
        %263 = vmatpush1.msra.mxu0 %v223
        %264 = vmatprep.subr.mxu0 0.0
        %265 = vmatpush1.msra.mxu0 %v222
        %266 = vmatprep.subr.mxu0 0.0
        %267 = vmatpush1.msra.mxu0 %v221
        %268 = vmatprep.subr.mxu0 0.0
        %269 = vmatpush2.msra.mxu0 0.0
        %270 = vmatprep.subr.mxu0 0.0
        %271 = vmatpush2.msra.mxu0 0.0
        %272 = vmatprep.subr.mxu0 0.0
        %273 = vmatpush2.msra.mxu0 0.0
        %274 = vmatprep.subr.mxu0 0.0
        %275 = vmatpush2.msra.mxu0 0.0
        %276 = vmatprep.subr.mxu0 0.0
        %277 = vmatpush2.msra.mxu0 0.0
        %278 = vmatprep.subr.mxu0 0.0
        %279 = vmatpush2.msra.mxu0 0.0
        %280 = vmatprep.subr.mxu0 0.0
        %281 = vmatpush2.msra.mxu0 0.0
        %282 = vmatprep.subr.mxu0 0.0
        %283 = vmatpush2.msra.mxu0 0.0
        %284 = vmatprep.subr.mxu0 0.0
        %285 = vmatpush2.msra.mxu0 0.0
        %286 = vmatprep.subr.mxu0 0.0
        %287 = vmatpush2.msra.mxu0 0.0
        %288 = vmatprep.subr.mxu0 0.0
        %289 = vmatpush2.msra.mxu0 0.0
        %290 = vmatprep.subr.mxu0 0.0
        %291 = vmatpush2.msra.mxu0 0.0
        %292 = vmatprep.subr.mxu0 0.0
        %293 = vmatpush2.msra.mxu0 0.0
        %294 = vmatprep.subr.mxu0 0.0
        %295 = vmatpush2.msra.mxu0 0.0
        %296 = vmatprep.subr.mxu0 0.0
        %297 = vmatpush2.msra.mxu0 0.0
        %298 = vmatprep.subr.mxu0 0.0
        %299 = vmatpush2.msra.mxu0 0.0
        %300 = vmatprep.mubr.f32.mxu0 0.0
        %301 = vmatmul.mubr.f32.gmra.mxu0 %v234
        %v302 = vpop.f32.mrf.mxu0
        %v303 = vadd.f32 %v230, %v302
        %v304 = vpop.f32.mrf.mxu0
        %305 = vdwg.mxu0
        %v306 = vmax.f32 %v303, 0.0
        %v307 = vld [vmem:[%s3] sm:$0xff]
        %v308 = vld [vmem:[%s3 + $0x8] sm:$0xff]
        %v309 = vld [vmem:[%s4] sm:$0x1]
        %v311 = vlaneseq
        %v312 = vshrl.u32 %v311, 7
        %v313 = vsub.s32 0, %v312
        %v314 = vrot.slane %v309, %v313
        %vm316 = vcmask 130048
        %v318 = vsel %vm316, %v306, 0
        %320 = vmatprep.subr.mxu0 0.0
        %321 = vmatpush1.msra.mxu0 0.0
        %322 = vmatprep.subr.mxu0 0.0
        %323 = vmatpush1.msra.mxu0 0.0
        %324 = vmatprep.subr.mxu0 0.0
        %325 = vmatpush1.msra.mxu0 0.0
        %326 = vmatprep.subr.mxu0 0.0
        %327 = vmatpush1.msra.mxu0 0.0
        %328 = vmatprep.subr.mxu0 0.0
        %329 = vmatpush1.msra.mxu0 0.0
        %330 = vmatprep.subr.mxu0 0.0
        %331 = vmatpush1.msra.mxu0 0.0
        %332 = vmatprep.subr.mxu0 0.0
        %333 = vmatpush1.msra.mxu0 0.0
        %334 = vmatprep.subr.mxu0 0.0
        %335 = vmatpush1.msra.mxu0 0.0
        %336 = vmatprep.subr.mxu0 0.0
        %337 = vmatpush1.msra.mxu0 0.0
        %338 = vmatprep.subr.mxu0 0.0
        %339 = vmatpush1.msra.mxu0 0.0
        %340 = vmatprep.subr.mxu0 0.0
        %341 = vmatpush1.msra.mxu0 0.0
        %342 = vmatprep.subr.mxu0 0.0
        %343 = vmatpush1.msra.mxu0 0.0
        %344 = vmatprep.subr.mxu0 0.0
        %345 = vmatpush1.msra.mxu0 0.0
        %346 = vmatprep.subr.mxu0 0.0
        %347 = vmatpush1.msra.mxu0 0.0
        %348 = vmatprep.subr.mxu0 0.0
        %349 = vmatpush1.msra.mxu0 %v308
        %350 = vmatprep.subr.mxu0 0.0
        %351 = vmatpush1.msra.mxu0 %v307
        %352 = vmatprep.subr.mxu0 0.0
        %353 = vmatpush2.msra.mxu0 0.0
        %354 = vmatprep.subr.mxu0 0.0
        %355 = vmatpush2.msra.mxu0 0.0
        %356 = vmatprep.subr.mxu0 0.0
        %357 = vmatpush2.msra.mxu0 0.0
        %358 = vmatprep.subr.mxu0 0.0
        %359 = vmatpush2.msra.mxu0 0.0
        %360 = vmatprep.subr.mxu0 0.0
        %361 = vmatpush2.msra.mxu0 0.0
        %362 = vmatprep.subr.mxu0 0.0
        %363 = vmatpush2.msra.mxu0 0.0
        %364 = vmatprep.subr.mxu0 0.0
        %365 = vmatpush2.msra.mxu0 0.0
        %366 = vmatprep.subr.mxu0 0.0
        %367 = vmatpush2.msra.mxu0 0.0
        %368 = vmatprep.subr.mxu0 0.0
        %369 = vmatpush2.msra.mxu0 0.0
        %370 = vmatprep.subr.mxu0 0.0
        %371 = vmatpush2.msra.mxu0 0.0
        %372 = vmatprep.subr.mxu0 0.0
        %373 = vmatpush2.msra.mxu0 0.0
        %374 = vmatprep.subr.mxu0 0.0
        %375 = vmatpush2.msra.mxu0 0.0
        %376 = vmatprep.subr.mxu0 0.0
        %377 = vmatpush2.msra.mxu0 0.0
        %378 = vmatprep.subr.mxu0 0.0
        %379 = vmatpush2.msra.mxu0 0.0
        %380 = vmatprep.subr.mxu0 0.0
        %381 = vmatpush2.msra.mxu0 0.0
        %382 = vmatprep.subr.mxu0 0.0
        %383 = vmatpush2.msra.mxu0 0.0
        %384 = vmatprep.mubr.f32.mxu0 0.0
        %385 = vmatmul.mubr.f32.gmra.mxu0 %v318
        %v386 = vpop.f32.mrf.mxu0
        %v387 = vadd.f32 %v314, %v386
        %v388 = vpop.f32.mrf.mxu0
        %389 = vdwg.mxu0
        %v390 = vmax.f32 %v387, 0.0
        %v391 = vadd.f32 %v390, %v220
        %392 = vst.msk [vmem:[%s215] sm:$0xff] %vm232, %v391
        %s393 = sand.u32 %s137, 1
        %s394 = scalar_lea.sflag [#allocation3], %s393
        %s395 = sand.u32 %s137, 1
        %s396 = smul.addr %s395, 8
        %s397 = scalar_lea.vmem [#allocation2], %s396
        // Predicated region
        $region41: #{tpu_custom_call.1} parent=39 // pred_check
          %p398 = pneg %p147
        $region42: #{tpu_custom_call.1} parent=39 // pred_check_branch
          %400 = sbr.rel (%p398) target = $region44
        $region43: #{tpu_custom_call.1} parent=39 // pred_region
          %s402 = ssub.s32 128, 128
          %403 = vsyncadd %s394, %s402
          %s404 = smul.addr %s19, 128
          %s405 = scalar_lea.hbm %s5, %s404
          %s407 = sshll.u32 %s397, 4
          %s408 = int_to_ptr.vmem [resolvable:$true] %s407
          %410 = dma.vmem_to_hbm [thread:$0]  %s408, 128, %s405, %s394
        $region44: #{tpu_custom_call.1} parent=39 // pred_fallthru
          _
      $region40: #{tpu_custom_call.1} parent=5 // pred_fallthru
        _
      %p411 = scmp.le.s32.totalorder 2, %s14
      // Predicated region
      $region45: #{tpu_custom_call.1} parent=5 // pred_check
        %p412 = pneg %p411
      $region46: #{tpu_custom_call.1} parent=5 // pred_check_branch
        %414 = sbr.rel (%p412) target = $region48
      $region47: #{tpu_custom_call.1} parent=5 // pred_region
        %s415 = ssub.s32 %s14, 2
        // Predicated region
        $region49: #{tpu_custom_call.1} parent=47 // pred_check
          %p416 = pneg %p153
        $region50: #{tpu_custom_call.1} parent=47 // pred_check_branch
          %418 = sbr.rel (%p416) target = $region52
        $region51: #{tpu_custom_call.1} parent=47 // pred_region
          %s419 = sand.u32 %s138, 1
          %s420 = scalar_lea.sflag [#allocation3], %s419
          %s421 = sand.u32 %s138, 1
          %s422 = smul.addr %s421, 8
          %s423 = scalar_lea.vmem [#allocation2], %s422
          %424 = dma.done %s420, 128
        $region52: #{tpu_custom_call.1} parent=47 // pred_fallthru
          _
      $region48: #{tpu_custom_call.1} parent=5 // pred_fallthru
        _
    $region6: #{tpu_custom_call.1} parent=1 // loop_footer
      %s18 = sadd.s32 1, %s14
    $region7: #{tpu_custom_call.1} parent=1 // loop_footer_branch
      %13 = sbr.rel target = $region3
    $region8: #{tpu_custom_call.1} parent=1 // loop_exit
      _
    %425 = vsyncpa [#allocation3], 1
    %s426 = scalar_lea.sflag [#allocation3], 1
    %427 = vsyncpa %s426, 1

// kernel: tpu_custom_call.1
$region0: #{tpu_custom_call.1}
  #allocation0 [shape = 'u32[]', space=smem, size = 0x4, offset = 0x4, fixed_abs, tag = 'smem constant byte address 0x4 - core index']
  #allocation1 [shape = 'u32[144,128]{1,0:T(1,128)}', space=vmem, size = 0x12000, scoped, tag = 'internal scratch']
  %s0 = inlined_call_operand.vmem [shape: f32[16,32], index: 0, kind: input, shape index: {}]
  %s1 = inlined_call_operand.vmem [shape: f32[32,16], index: 1, kind: input, shape index: {}]
  %s2 = inlined_call_operand.vmem [shape: f32[1,16], index: 2, kind: input, shape index: {}]
  %s3 = inlined_call_operand.vmem [shape: f32[16,32], index: 3, kind: input, shape index: {}]
  %s4 = inlined_call_operand.vmem [shape: f32[1,32], index: 4, kind: input, shape index: {}]
  %s5 = inlined_call_operand.hbm [shape: f32[16,32], index: 5, kind: output, shape index: {}]
  %s6 = sld [smem:[#allocation0]]
  $region53: #{tpu_custom_call.1} parent=0
    _
  %s8 = ssub.s32 1, %s6
  %s9 = scalar_select 0, %s8, %s6
  $region1: #{tpu_custom_call.1} parent=0
    #allocation2 [shape = 'u8[8192]{0}', space=vmem, size = 0x2000, scoped, tag = 'output window, operand 0']
    #allocation3 [shape = 's32[2]{0}', space=sflag, size = 0x8, scoped, tag = 'scoped memory for tpu_custom_call.1']
    %10 = vsyncpa [#allocation3], 0
    %s11 = scalar_lea.sflag [#allocation3], 1
    %12 = vsyncpa %s11, 0
    loop: start=0, step=1, limit=4
    $region2: #{tpu_custom_call.1} parent=1 // loop_pre_header
      _
    $region3: #{tpu_custom_call.1} parent=1 // loop_header
      %s14 = sphi 0, %s18
      %p15 = scmp.ge.s32.totalorder %s14, 4
      %s24 = sphi 0, %s26
      %s27 = sphi 0, %s24
      %s28 = sphi 0, %s27
      %s44 = sphi 0, %s28
      %s48 = sphi 0, %s48
      %s50 = sphi 0, %s48
      %s51 = sphi 0, %s50
      %s65 = sphi 0, %s51
      %s69 = sphi 0, %s69
      %s71 = sphi 0, %s69
      %s72 = sphi 0, %s71
      %s86 = sphi 0, %s72
      %s90 = sphi 0, %s90
      %s92 = sphi 0, %s90
      %s93 = sphi 0, %s92
      %s107 = sphi 0, %s93
      %s111 = sphi 0, %s111
      %s113 = sphi 0, %s111
      %s114 = sphi 0, %s113
      %s128 = sphi 0, %s114
      %s134 = sphi 0, %s136
      %s137 = sphi 0, %s134
      %s138 = sphi 0, %s137
      %s154 = sphi 0, %s138
    $region4: #{tpu_custom_call.1} parent=1 // loop_header_branch
      %17 = sbr.rel (%p15) target = $region8
    $region5: #{tpu_custom_call.1} parent=1 // loop_body
      %s19 = ssub.s32 %s14, 1
      %s20 = ssub.s32 %s14, 2
      %s21 = sadd.s32 %s14, 1
      %s22 = ssub.s32 %s14, %s21
      %p23 = scmp.eq.s32.totalorder %s22, 0
      %s25 = sadd.s32 %s24, 1
      %s26 = scalar_select %p23, %s24, %s25
      %p29 = pneg %p23
      %p30 = scmp.eq.s32.totalorder %s14, 1
      %p31 = por %p29, %p30
      %p32 = scmp.ne.s32.totalorder %s24, %s27
      %p33 = scmp.eq.s32.totalorder %s14, 0
      %p34 = por %p32, %p33
      %p35 = scmp.ne.s32.totalorder %s24, %s27
      %p36 = scmp.eq.s32.totalorder %s19, 1
      %p37 = por %p35, %p36
      %p38 = scmp.ne.s32.totalorder %s27, %s28
      %p39 = scmp.eq.s32.totalorder %s19, 0
      %p40 = por %p38, %p39
      %p41 = scmp.ne.s32.totalorder %s27, %s28
      %p42 = scmp.eq.s32.totalorder %s20, 1
      %p43 = por %p41, %p42
      %p45 = scmp.ne.s32.totalorder %s28, %s44
      %p46 = scmp.eq.s32.totalorder %s20, 0
      %p47 = por %p45, %p46
      %s49 = sadd.s32 %s48, 1
      %p52 = scmp.eq.s32.totalorder %s14, 1
      %p53 = scmp.ne.s32.totalorder %s48, %s50
      %p54 = scmp.eq.s32.totalorder %s14, 0
      %p55 = por %p53, %p54
      %p56 = scmp.ne.s32.totalorder %s48, %s50
      %p57 = scmp.eq.s32.totalorder %s19, 1
      %p58 = por %p56, %p57
      %p59 = scmp.ne.s32.totalorder %s50, %s51
      %p60 = scmp.eq.s32.totalorder %s19, 0
      %p61 = por %p59, %p60
      %p62 = scmp.ne.s32.totalorder %s50, %s51
      %p63 = scmp.eq.s32.totalorder %s20, 1
      %p64 = por %p62, %p63
      %p66 = scmp.ne.s32.totalorder %s51, %s65
      %p67 = scmp.eq.s32.totalorder %s20, 0
      %p68 = por %p66, %p67
      %s70 = sadd.s32 %s69, 1
      %p73 = scmp.eq.s32.totalorder %s14, 1
      %p74 = scmp.ne.s32.totalorder %s69, %s71
      %p75 = scmp.eq.s32.totalorder %s14, 0
      %p76 = por %p74, %p75
      %p77 = scmp.ne.s32.totalorder %s69, %s71
      %p78 = scmp.eq.s32.totalorder %s19, 1
      %p79 = por %p77, %p78
      %p80 = scmp.ne.s32.totalorder %s71, %s72
      %p81 = scmp.eq.s32.totalorder %s19, 0
      %p82 = por %p80, %p81
      %p83 = scmp.ne.s32.totalorder %s71, %s72
      %p84 = scmp.eq.s32.totalorder %s20, 1
      %p85 = por %p83, %p84
      %p87 = scmp.ne.s32.totalorder %s72, %s86
      %p88 = scmp.eq.s32.totalorder %s20, 0
      %p89 = por %p87, %p88
      %s91 = sadd.s32 %s90, 1
      %p94 = scmp.eq.s32.totalorder %s14, 1
      %p95 = scmp.ne.s32.totalorder %s90, %s92
      %p96 = scmp.eq.s32.totalorder %s14, 0
      %p97 = por %p95, %p96
      %p98 = scmp.ne.s32.totalorder %s90, %s92
      %p99 = scmp.eq.s32.totalorder %s19, 1
      %p100 = por %p98, %p99
      %p101 = scmp.ne.s32.totalorder %s92, %s93
      %p102 = scmp.eq.s32.totalorder %s19, 0
      %p103 = por %p101, %p102
      %p104 = scmp.ne.s32.totalorder %s92, %s93
      %p105 = scmp.eq.s32.totalorder %s20, 1
      %p106 = por %p104, %p105
      %p108 = scmp.ne.s32.totalorder %s93, %s107
      %p109 = scmp.eq.s32.totalorder %s20, 0
      %p110 = por %p108, %p109
      %s112 = sadd.s32 %s111, 1
      %p115 = scmp.eq.s32.totalorder %s14, 1
      %p116 = scmp.ne.s32.totalorder %s111, %s113
      %p117 = scmp.eq.s32.totalorder %s14, 0
      %p118 = por %p116, %p117
      %p119 = scmp.ne.s32.totalorder %s111, %s113
      %p120 = scmp.eq.s32.totalorder %s19, 1
      %p121 = por %p119, %p120
      %p122 = scmp.ne.s32.totalorder %s113, %s114
      %p123 = scmp.eq.s32.totalorder %s19, 0
      %p124 = por %p122, %p123
      %p125 = scmp.ne.s32.totalorder %s113, %s114
      %p126 = scmp.eq.s32.totalorder %s20, 1
      %p127 = por %p125, %p126
      %p129 = scmp.ne.s32.totalorder %s114, %s128
      %p130 = scmp.eq.s32.totalorder %s20, 0
      %p131 = por %p129, %p130
      %s132 = ssub.s32 %s14, %s21
      %p133 = scmp.eq.s32.totalorder %s132, 0
      %s135 = sadd.s32 %s134, 1
      %s136 = scalar_select %p133, %s134, %s135
      %p139 = pneg %p133
      %p140 = scmp.eq.s32.totalorder %s14, 1
      %p141 = por %p139, %p140
      %p142 = scmp.ne.s32.totalorder %s134, %s137
      %p143 = scmp.eq.s32.totalorder %s14, 0
      %p144 = por %p142, %p143
      %p145 = scmp.ne.s32.totalorder %s134, %s137
      %p146 = scmp.eq.s32.totalorder %s19, 1
      %p147 = por %p145, %p146
      %p148 = scmp.ne.s32.totalorder %s137, %s138
      %p149 = scmp.eq.s32.totalorder %s19, 0
      %p150 = por %p148, %p149
      %p151 = scmp.ne.s32.totalorder %s137, %s138
      %p152 = scmp.eq.s32.totalorder %s20, 1
      %p153 = por %p151, %p152
      %p155 = scmp.ne.s32.totalorder %s138, %s154
      %p156 = scmp.eq.s32.totalorder %s20, 0
      %p157 = por %p155, %p156
      %p158 = scmp.le.s32.totalorder 1, %s14
      %p159 = scmp.lt.s32.totalorder %s14, 3
      %p160 = pnand %p158, %p159
      %p161 = pneg %p160
      // Predicated region
      $region9: #{tpu_custom_call.1} parent=5 // pred_check
        _
      $region10: #{tpu_custom_call.1} parent=5 // pred_check_branch
        %163 = sbr.rel (%p160) target = $region12
      $region11: #{tpu_custom_call.1} parent=5 // pred_region
        %s164 = ssub.s32 %s14, 1
        // Predicated region
        $region13: #{tpu_custom_call.1} parent=11 // pred_check
          %p165 = pneg %p61
        $region14: #{tpu_custom_call.1} parent=11 // pred_check_branch
          %167 = sbr.rel (%p165) target = $region16
        $region15: #{tpu_custom_call.1} parent=11 // pred_region
          _
        $region16: #{tpu_custom_call.1} parent=11 // pred_fallthru
          _
        // Predicated region
        $region17: #{tpu_custom_call.1} parent=11 // pred_check
          %p168 = pneg %p82
        $region18: #{tpu_custom_call.1} parent=11 // pred_check_branch
          %170 = sbr.rel (%p168) target = $region20
        $region19: #{tpu_custom_call.1} parent=11 // pred_region
          _
        $region20: #{tpu_custom_call.1} parent=11 // pred_fallthru
          _
        // Predicated region
        $region21: #{tpu_custom_call.1} parent=11 // pred_check
          %p171 = pneg %p103
        $region22: #{tpu_custom_call.1} parent=11 // pred_check_branch
          %173 = sbr.rel (%p171) target = $region24
        $region23: #{tpu_custom_call.1} parent=11 // pred_region
          _
        $region24: #{tpu_custom_call.1} parent=11 // pred_fallthru
          _
        // Predicated region
        $region25: #{tpu_custom_call.1} parent=11 // pred_check
          %p174 = pneg %p124
        $region26: #{tpu_custom_call.1} parent=11 // pred_check_branch
          %176 = sbr.rel (%p174) target = $region28
        $region27: #{tpu_custom_call.1} parent=11 // pred_region
          _
        $region28: #{tpu_custom_call.1} parent=11 // pred_fallthru
          _
      $region12: #{tpu_custom_call.1} parent=5 // pred_fallthru
        _
      %p177 = scmp.lt.s32.totalorder %s14, 2
      // Predicated region
      $region29: #{tpu_custom_call.1} parent=5 // pred_check
        %p178 = pneg %p177
      $region30: #{tpu_custom_call.1} parent=5 // pred_check_branch
        %180 = sbr.rel (%p178) target = $region32
      $region31: #{tpu_custom_call.1} parent=5 // pred_region
        // Predicated region
        $region33: #{tpu_custom_call.1} parent=31 // pred_check
          %p181 = pneg %p34
        $region34: #{tpu_custom_call.1} parent=31 // pred_check_branch
          %183 = sbr.rel (%p181) target = $region36
        $region35: #{tpu_custom_call.1} parent=31 // pred_region
          %p184 = scmp.lt.s32.totalorder %s14, 1
          %s185 = scalar_select %p184, %s14, 1
          %s186 = smul.addr %s185, 8
          %s187 = scalar_lea.vmem %s0, %s186
        $region36: #{tpu_custom_call.1} parent=31 // pred_fallthru
          _
      $region32: #{tpu_custom_call.1} parent=5 // pred_fallthru
        _
      %p188 = scmp.le.s32.totalorder 1, %s14
      %p189 = scmp.lt.s32.totalorder %s14, 3
      %p190 = pnand %p188, %p189
      %p191 = pneg %p190
      // Predicated region
      $region37: #{tpu_custom_call.1} parent=5 // pred_check
        _
      $region38: #{tpu_custom_call.1} parent=5 // pred_check_branch
        %193 = sbr.rel (%p190) target = $region40
      $region39: #{tpu_custom_call.1} parent=5 // pred_region
        %s194 = ssub.s32 %s14, 1
        %p195 = scmp.lt.s32.totalorder %s19, 1
        %s196 = scalar_select %p195, %s19, 1
        %s197 = smul.addr %s196, 8
        %s198 = scalar_lea.vmem %s0, %s197
        %p199 = pneg %p40
        %p200 = pneg %p37
        %p201 = pneg %p61
        %p202 = pneg %p58
        %p203 = pneg %p82
        %p204 = pneg %p79
        %p205 = pneg %p103
        %p206 = pneg %p100
        %p207 = pneg %p124
        %p208 = pneg %p121
        %p209 = pneg %p150
        %p210 = pneg %p147
        %s211 = sand.u32 %s137, 1
        %s212 = scalar_lea.sflag [#allocation3], %s211
        %s213 = sand.u32 %s137, 1
        %s214 = smul.addr %s213, 8
        %s215 = scalar_lea.vmem [#allocation2], %s214
        %p216 = scmp.lt.s32.totalorder %s19, 1
        %s217 = scalar_select %p216, %s19, 1
        %s218 = smul.addr %s217, 8
        %s219 = scalar_lea.vmem %s0, %s218
        %v220 = vld [vmem:[%s219] sm:$0xff]
        %v221 = vld [vmem:[%s1] sm:$0xff]
        %v222 = vld [vmem:[%s1 + $0x8] sm:$0xff]
        %v223 = vld [vmem:[%s1 + $0x10] sm:$0xff]
        %v224 = vld [vmem:[%s1 + $0x18] sm:$0xff]
        %v225 = vld [vmem:[%s2] sm:$0x1]
        %v227 = vlaneseq
        %v228 = vshrl.u32 %v227, 7
        %v229 = vsub.s32 0, %v228
        %v230 = vrot.slane %v225, %v229
        %vm232 = vcmask 261120
        %v234 = vsel %vm232, %v220, 0
        %236 = vmatprep.subr.mxu0 0.0
        %237 = vmatpush1.msra.mxu0 0.0
        %238 = vmatprep.subr.mxu0 0.0
        %239 = vmatpush1.msra.mxu0 0.0
        %240 = vmatprep.subr.mxu0 0.0
        %241 = vmatpush1.msra.mxu0 0.0
        %242 = vmatprep.subr.mxu0 0.0
        %243 = vmatpush1.msra.mxu0 0.0
        %244 = vmatprep.subr.mxu0 0.0
        %245 = vmatpush1.msra.mxu0 0.0
        %246 = vmatprep.subr.mxu0 0.0
        %247 = vmatpush1.msra.mxu0 0.0
        %248 = vmatprep.subr.mxu0 0.0
        %249 = vmatpush1.msra.mxu0 0.0
        %250 = vmatprep.subr.mxu0 0.0
        %251 = vmatpush1.msra.mxu0 0.0
        %252 = vmatprep.subr.mxu0 0.0
        %253 = vmatpush1.msra.mxu0 0.0
        %254 = vmatprep.subr.mxu0 0.0
        %255 = vmatpush1.msra.mxu0 0.0
        %256 = vmatprep.subr.mxu0 0.0
        %257 = vmatpush1.msra.mxu0 0.0
        %258 = vmatprep.subr.mxu0 0.0
        %259 = vmatpush1.msra.mxu0 0.0
        %260 = vmatprep.subr.mxu0 0.0
        %261 = vmatpush1.msra.mxu0 %v224
        %262 = vmatprep.subr.mxu0 0.0
        %263 = vmatpush1.msra.mxu0 %v223
        %264 = vmatprep.subr.mxu0 0.0
        %265 = vmatpush1.msra.mxu0 %v222
        %266 = vmatprep.subr.mxu0 0.0
        %267 = vmatpush1.msra.mxu0 %v221
        %268 = vmatprep.subr.mxu0 0.0
        %269 = vmatpush2.msra.mxu0 0.0
        %270 = vmatprep.subr.mxu0 0.0
        %271 = vmatpush2.msra.mxu0 0.0
        %272 = vmatprep.subr.mxu0 0.0
        %273 = vmatpush2.msra.mxu0 0.0
        %274 = vmatprep.subr.mxu0 0.0
        %275 = vmatpush2.msra.mxu0 0.0
        %276 = vmatprep.subr.mxu0 0.0
        %277 = vmatpush2.msra.mxu0 0.0
        %278 = vmatprep.subr.mxu0 0.0
        %279 = vmatpush2.msra.mxu0 0.0
        %280 = vmatprep.subr.mxu0 0.0
        %281 = vmatpush2.msra.mxu0 0.0
        %282 = vmatprep.subr.mxu0 0.0
        %283 = vmatpush2.msra.mxu0 0.0
        %284 = vmatprep.subr.mxu0 0.0
        %285 = vmatpush2.msra.mxu0 0.0
        %286 = vmatprep.subr.mxu0 0.0
        %287 = vmatpush2.msra.mxu0 0.0
        %288 = vmatprep.subr.mxu0 0.0
        %289 = vmatpush2.msra.mxu0 0.0
        %290 = vmatprep.subr.mxu0 0.0
        %291 = vmatpush2.msra.mxu0 0.0
        %292 = vmatprep.subr.mxu0 0.0
        %293 = vmatpush2.msra.mxu0 0.0
        %294 = vmatprep.subr.mxu0 0.0
        %295 = vmatpush2.msra.mxu0 0.0
        %296 = vmatprep.subr.mxu0 0.0
        %297 = vmatpush2.msra.mxu0 0.0
        %298 = vmatprep.subr.mxu0 0.0
        %299 = vmatpush2.msra.mxu0 0.0
        %300 = vmatprep.mubr.f32.mxu0 0.0
        %301 = vmatmul.mubr.f32.gmra.mxu0 %v234
        %v302 = vpop.f32.mrf.mxu0
        %v303 = vadd.f32 %v230, %v302
        %v304 = vpop.f32.mrf.mxu0
        %305 = vdwg.mxu0
        %v306 = vmax.f32 %v303, 0.0
        %v307 = vld [vmem:[%s3] sm:$0xff]
        %v308 = vld [vmem:[%s3 + $0x8] sm:$0xff]
        %v309 = vld [vmem:[%s4] sm:$0x1]
        %v311 = vlaneseq
        %v312 = vshrl.u32 %v311, 7
        %v313 = vsub.s32 0, %v312
        %v314 = vrot.slane %v309, %v313
        %vm316 = vcmask 130048
        %v318 = vsel %vm316, %v306, 0
        %320 = vmatprep.subr.mxu0 0.0
        %321 = vmatpush1.msra.mxu0 0.0
        %322 = vmatprep.subr.mxu0 0.0
        %323 = vmatpush1.msra.mxu0 0.0
        %324 = vmatprep.subr.mxu0 0.0
        %325 = vmatpush1.msra.mxu0 0.0
        %326 = vmatprep.subr.mxu0 0.0
        %327 = vmatpush1.msra.mxu0 0.0
        %328 = vmatprep.subr.mxu0 0.0
        %329 = vmatpush1.msra.mxu0 0.0
        %330 = vmatprep.subr.mxu0 0.0
        %331 = vmatpush1.msra.mxu0 0.0
        %332 = vmatprep.subr.mxu0 0.0
        %333 = vmatpush1.msra.mxu0 0.0
        %334 = vmatprep.subr.mxu0 0.0
        %335 = vmatpush1.msra.mxu0 0.0
        %336 = vmatprep.subr.mxu0 0.0
        %337 = vmatpush1.msra.mxu0 0.0
        %338 = vmatprep.subr.mxu0 0.0
        %339 = vmatpush1.msra.mxu0 0.0
        %340 = vmatprep.subr.mxu0 0.0
        %341 = vmatpush1.msra.mxu0 0.0
        %342 = vmatprep.subr.mxu0 0.0
        %343 = vmatpush1.msra.mxu0 0.0
        %344 = vmatprep.subr.mxu0 0.0
        %345 = vmatpush1.msra.mxu0 0.0
        %346 = vmatprep.subr.mxu0 0.0
        %347 = vmatpush1.msra.mxu0 0.0
        %348 = vmatprep.subr.mxu0 0.0
        %349 = vmatpush1.msra.mxu0 %v308
        %350 = vmatprep.subr.mxu0 0.0
        %351 = vmatpush1.msra.mxu0 %v307
        %352 = vmatprep.subr.mxu0 0.0
        %353 = vmatpush2.msra.mxu0 0.0
        %354 = vmatprep.subr.mxu0 0.0
        %355 = vmatpush2.msra.mxu0 0.0
        %356 = vmatprep.subr.mxu0 0.0
        %357 = vmatpush2.msra.mxu0 0.0
        %358 = vmatprep.subr.mxu0 0.0
        %359 = vmatpush2.msra.mxu0 0.0
        %360 = vmatprep.subr.mxu0 0.0
        %361 = vmatpush2.msra.mxu0 0.0
        %362 = vmatprep.subr.mxu0 0.0
        %363 = vmatpush2.msra.mxu0 0.0
        %364 = vmatprep.subr.mxu0 0.0
        %365 = vmatpush2.msra.mxu0 0.0
        %366 = vmatprep.subr.mxu0 0.0
        %367 = vmatpush2.msra.mxu0 0.0
        %368 = vmatprep.subr.mxu0 0.0
        %369 = vmatpush2.msra.mxu0 0.0
        %370 = vmatprep.subr.mxu0 0.0
        %371 = vmatpush2.msra.mxu0 0.0
        %372 = vmatprep.subr.mxu0 0.0
        %373 = vmatpush2.msra.mxu0 0.0
        %374 = vmatprep.subr.mxu0 0.0
        %375 = vmatpush2.msra.mxu0 0.0
        %376 = vmatprep.subr.mxu0 0.0
        %377 = vmatpush2.msra.mxu0 0.0
        %378 = vmatprep.subr.mxu0 0.0
        %379 = vmatpush2.msra.mxu0 0.0
        %380 = vmatprep.subr.mxu0 0.0
        %381 = vmatpush2.msra.mxu0 0.0
        %382 = vmatprep.subr.mxu0 0.0
        %383 = vmatpush2.msra.mxu0 0.0
        %384 = vmatprep.mubr.f32.mxu0 0.0
        %385 = vmatmul.mubr.f32.gmra.mxu0 %v318
        %v386 = vpop.f32.mrf.mxu0
        %v387 = vadd.f32 %v314, %v386
        %v388 = vpop.f32.mrf.mxu0
        %389 = vdwg.mxu0
        %v390 = vmax.f32 %v387, 0.0
        %v391 = vadd.f32 %v390, %v220
        %392 = vst.msk [vmem:[%s215] sm:$0xff] %vm232, %v391
        %s393 = sand.u32 %s137, 1
        %s394 = scalar_lea.sflag [#allocation3], %s393
        %s395 = sand.u32 %s137, 1
        %s396 = smul.addr %s395, 8
        %s397 = scalar_lea.vmem [#allocation2], %s396
        // Predicated region
        $region41: #{tpu_custom_call.1} parent=39 // pred_check
          %p398 = pneg %p147
        $region42: #{tpu_custom_call.1} parent=39 // pred_check_branch
          %400 = sbr.rel (%p398) target = $region44
        $region43: #{tpu_custom_call.1} parent=39 // pred_region
          %s402 = ssub.s32 128, 128
          %403 = vsyncadd %s394, %s402
          %s404 = smul.addr %s19, 128
          %s405 = scalar_lea.hbm %s5, %s404
          %s407 = sshll.u32 %s397, 4
          %s408 = int_to_ptr.vmem [resolvable:$true] %s407
          %410 = dma.vmem_to_hbm [thread:$0]  %s408, 128, %s405, %s394
        $region44: #{tpu_custom_call.1} parent=39 // pred_fallthru
          _
      $region40: #{tpu_custom_call.1} parent=5 // pred_fallthru
        _
      %p411 = scmp.le.s32.totalorder 2, %s14
      // Predicated region
      $region45: #{tpu_custom_call.1} parent=5 // pred_check
        %p412 = pneg %p411
      $region46: #{tpu_custom_call.1} parent=5 // pred_check_branch
        %414 = sbr.rel (%p412) target = $region48
      $region47: #{tpu_custom_call.1} parent=5 // pred_region
        %s415 = ssub.s32 %s14, 2
        // Predicated region
        $region49: #{tpu_custom_call.1} parent=47 // pred_check
          %p416 = pneg %p153
        $region50: #{tpu_custom_call.1} parent=47 // pred_check_branch
          %418 = sbr.rel (%p416) target = $region52
        $region51: #{tpu_custom_call.1} parent=47 // pred_region
          %s419 = sand.u32 %s138, 1
          %s420 = scalar_lea.sflag [#allocation3], %s419
          %s421 = sand.u32 %s138, 1
          %s422 = smul.addr %s421, 8
          %s423 = scalar_lea.vmem [#allocation2], %s422
          %424 = dma.done %s420, 128
        $region52: #{tpu_custom_call.1} parent=47 // pred_fallthru
          _
      $region48: #{tpu_custom_call.1} parent=5 // pred_fallthru
        _
    $region6: #{tpu_custom_call.1} parent=1 // loop_footer
      %s18 = sadd.s32 1, %s14
    $region7: #{tpu_custom_call.1} parent=1 // loop_footer_branch
      %13 = sbr.rel target = $region3
    $region8: #{tpu_custom_call.1} parent=1 // loop_exit
      _
    %425 = vsyncpa [#allocation3], 1
    %s426 = scalar_lea.sflag [#allocation3], 1
    %427 = vsyncpa %s426, 1

</llo_original>
